<compile_context>
chip_gen: v5e
topology: v5e:2x2
jax: 0.10.0
libtpu: 0.0.40
codegen_flags: <defaults>
</compile_context>

<pallas_src>
import functools

import jax
import jax.numpy as jnp
from jax.experimental import pallas as pl
from jax.experimental.pallas import tpu as pltpu


def lstm_recurrence_kernel(x_ref, wih_ref, whh_ref, b_ref, h_all_ref, *,
                           seq_len, batch):
    """Whole-sequence LSTM recurrence in one invocation.

    x_ref     : (T*Bp, E)  bf16, time-major flattened input (row = t*Bp + b)
    wih_ref   : (E, 4H)    bf16, input->gates weight (pre-transposed)
    whh_ref   : (H, 4H)    bf16, hidden->gates weight (pre-transposed)
    b_ref     : (1, 4H)    f32,  b_ih + b_hh
    h_all_ref : (T*Bp, H)  bf16, every timestep's hidden state (output)
    """
    H = whh_ref.shape[0]
    whh = whh_ref[...]                                     # (H, 4H) bf16, hoisted

    # 1) Hoisted input projection for all timesteps: one big MXU matmul.
    xg = (jnp.dot(x_ref[...], wih_ref[...],
                  preferred_element_type=jnp.float32)
          + b_ref[...])                                    # (T*Bp, 4H) f32

    # 2) Serial recurrence (statically unrolled; only h @ W_hh on the chain).
    h = jnp.zeros((batch, H), jnp.float32)
    c = jnp.zeros((batch, H), jnp.float32)
    hs = []
    for t in range(seq_len):
        gates = (xg[t * batch:(t + 1) * batch, :]
                 + jnp.dot(h.astype(jnp.bfloat16), whh,
                           preferred_element_type=jnp.float32))   # (Bp, 4H) f32
        # Full-width nonlinearities: one sigmoid + one tanh over the whole
        # gates vreg, then select columns.  PyTorch gate order [i, f, g, o].
        sig = jax.nn.sigmoid(gates)                        # (Bp, 4H)
        th = jnp.tanh(gates)                               # (Bp, 4H)
        i = sig[:, 0 * H:1 * H]
        f = sig[:, 1 * H:2 * H]
        g = th[:, 2 * H:3 * H]
        o = sig[:, 3 * H:4 * H]
        c = f * c + i * g
        h = o * jnp.tanh(c)
        hs.append(h)

    # 3) Whole hidden history kept in registers; single store, bf16.
    h_all_ref[...] = jnp.concatenate(hs, axis=0).astype(jnp.bfloat16)


def fc_kernel(h_ref, wfc_ref, bfc_ref, y_ref):
    """One vocab tile of the FC projection: (T*Bp, H) @ (H, TN) + bias."""
    y_ref[...] = (jnp.dot(h_ref[...], wfc_ref[...],
                          preferred_element_type=jnp.float32)
                  + bfc_ref[...])


def decoder_rnn_forward(features, captions, params):
    """Pallas equivalent of DecoderRNN.forward(features, captions)."""
    embed_tbl = params["embed"]                      # (vocab, E)
    w_ih, w_hh = params["w_ih"], params["w_hh"]      # (4H, E), (4H, H)
    b_ih, b_hh = params["b_ih"], params["b_hh"]      # (4H,), (4H,)
    w_fc, b_fc = params["w_fc"], params["b_fc"]      # (V, H), (V,)

    # ---- glue (embedding lookup + concat + layout), done once in XLA ----
    cap_emb = jnp.take(embed_tbl, captions[:, :-1], axis=0)       # (B, T-1, E)
    x = jnp.concatenate([features[:, None, :], cap_emb], axis=1)  # (B, T, E)
    B, T, E = x.shape
    H = w_hh.shape[1]
    V = w_fc.shape[0]
    Bp = ((B + 7) // 8) * 8                          # sublane-aligned batch
    Vp = ((V + 127) // 128) * 128                    # lane-dense padded vocab

    # pad batch to a sublane multiple (padded rows are independent garbage,
    # sliced off below) and flatten time-major (row = t*Bp + b); bf16 operands.
    x_pad = jnp.zeros((Bp, T, E), x.dtype).at[:B].set(x)
    x_flat = jnp.transpose(x_pad, (1, 0, 2)).reshape(T * Bp, E).astype(jnp.bfloat16)
    w_ih_t = jnp.transpose(w_ih).astype(jnp.bfloat16)              # (E, 4H)
    w_hh_t = jnp.transpose(w_hh).astype(jnp.bfloat16)              # (H, 4H)
    bias = (b_ih + b_hh)[None, :].astype(jnp.float32)              # (1, 4H)
    w_fc_t = jnp.zeros((H, Vp), jnp.bfloat16).at[:, :V].set(
        jnp.transpose(w_fc).astype(jnp.bfloat16))                  # (H, Vp)
    b_fc_r = jnp.zeros((1, Vp), jnp.float32).at[0, :V].set(
        b_fc.astype(jnp.float32))                                  # (1, Vp)

    # ---- kernel A: the serial recurrence (single invocation) ----
    rec_kernel = functools.partial(lstm_recurrence_kernel, seq_len=T, batch=Bp)
    h_all = pl.pallas_call(
        rec_kernel,
        out_shape=jax.ShapeDtypeStruct((T * Bp, H), jnp.bfloat16),
        in_specs=[pl.BlockSpec(memory_space=pltpu.MemorySpace.VMEM)] * 4,
        out_specs=pl.BlockSpec(memory_space=pltpu.MemorySpace.VMEM),
    )(x_flat, w_ih_t, w_hh_t, bias)

    # ---- kernel B: FC projection, gridded over vocab tiles ----
    TN = 128
    for cand in (1024, 512, 256, 128):              # largest tile dividing Vp
        if Vp % cand == 0:
            TN = cand
            break
    y_flat = pl.pallas_call(
        fc_kernel,
        out_shape=jax.ShapeDtypeStruct((T * Bp, Vp), jnp.float32),
        grid=(Vp // TN,),
        in_specs=[pl.BlockSpec((T * Bp, H), lambda j: (0, 0)),     # resident
                  pl.BlockSpec((H, TN), lambda j: (0, j)),
                  pl.BlockSpec((1, TN), lambda j: (0, j))],
        out_specs=pl.BlockSpec((T * Bp, TN), lambda j: (0, j)),
        compiler_params=pltpu.CompilerParams(
            dimension_semantics=("parallel",)),
        cost_estimate=pl.CostEstimate(
            flops=2 * T * Bp * H * Vp,
            transcendentals=0,
            bytes_accessed=T * Bp * H * 2 + H * Vp * 2 + Vp * 4 + T * Bp * Vp * 4),
    )(h_all, w_fc_t, b_fc_r)

    # drop batch/vocab padding, back to batch-first (tiny tensor here)
    y = y_flat.reshape(T, Bp, Vp)[:, :B, :V]
    return jnp.transpose(y, (1, 0, 2))               # (B, T, V)


def reference_forward(features, captions, params):
    """Pure-JAX f32 reference matching PyTorch semantics."""
    cap_emb = jnp.take(params["embed"], captions[:, :-1], axis=0)
    x = jnp.concatenate([features[:, None, :], cap_emb], axis=1)
    B, T, E = x.shape
    H = params["w_hh"].shape[1]

    def step(carry, x_t):
        h, c = carry
        gates = (x_t @ params["w_ih"].T + params["b_ih"]
                 + h @ params["w_hh"].T + params["b_hh"])
        i, f, g, o = jnp.split(gates, 4, axis=-1)
        i, f, o = jax.nn.sigmoid(i), jax.nn.sigmoid(f), jax.nn.sigmoid(o)
        g = jnp.tanh(g)
        c = f * c + i * g
        h = o * jnp.tanh(c)
        return (h, c), h

    h0 = jnp.zeros((B, H), jnp.float32)
    _, hs = jax.lax.scan(step, (h0, h0), jnp.transpose(x, (1, 0, 2)))
    y = hs @ params["w_fc"].T + params["b_fc"]       # (T, B, V)
    return jnp.transpose(y, (1, 0, 2))


if __name__ == "__main__":
    # Small shapes consistent with the module's forward().
    B = 2            # batch
    E = 32           # embed_size
    H = 32           # hidden_size
    V = 48           # vocab_size
    CAP_LEN = 8      # caption length -> LSTM seq length T = 8 (1 feature + 7 words)

    key = jax.random.PRNGKey(0)
    keys = jax.random.split(key, 9)
    scale = 0.1
    params = {
        "embed": scale * jax.random.normal(keys[0], (V, E), jnp.float32),
        "w_ih": scale * jax.random.normal(keys[1], (4 * H, E), jnp.float32),
        "w_hh": scale * jax.random.normal(keys[2], (4 * H, H), jnp.float32),
        "b_ih": scale * jax.random.normal(keys[3], (4 * H,), jnp.float32),
        "b_hh": scale * jax.random.normal(keys[4], (4 * H,), jnp.float32),
        "w_fc": scale * jax.random.normal(keys[5], (V, H), jnp.float32),
        "b_fc": scale * jax.random.normal(keys[6], (V,), jnp.float32),
    }

    features = jax.random.normal(keys[7], (B, E), jnp.float32)
    captions = jax.random.randint(keys[8], (B, CAP_LEN), 0, V, jnp.int32)

    y = jax.block_until_ready(decoder_rnn_forward(features, captions, params))
    assert y.shape == (B, CAP_LEN, V), y.shape

    y_ref = jax.block_until_ready(reference_forward(features, captions, params))
    # bf16 MXU operands vs f32 reference -> ~1e-2 class tolerance.
    err = float(jnp.max(jnp.abs(y - y_ref)))
    assert err < 2.5e-2, err

    # TODO(synk): beam_search / sample / naive_sampling (multinomial sampling,
    # topk over dynamic beams) are inference-only control flow and are not
    # implemented as Pallas kernels here.
    print("KERNEL_OK")
</pallas_src>

<mosaic_0001>
module attributes {stable_mosaic.version = 11 : i64} {
  func.func @lstm_recurrence_kernel(%arg0: memref<64x32xbf16, #tpu.memory_space<vmem>>, %arg1: memref<32x128xbf16, #tpu.memory_space<vmem>>, %arg2: memref<32x128xbf16, #tpu.memory_space<vmem>>, %arg3: memref<1x128xf32, #tpu.memory_space<vmem>>, %arg4: memref<64x32xbf16, #tpu.memory_space<vmem>>) attributes {dimension_semantics = [], scalar_prefetch = 0 : i64, scratch_operands = 0 : i64, tpu.core_type = #tpu.core_type<tc>} {
    %c0 = arith.constant 0 : index
    %c0_0 = arith.constant 0 : index
    %0 = vector.load %arg2[%c0, %c0_0] : memref<32x128xbf16, #tpu.memory_space<vmem>>, vector<32x128xbf16>
    %c0_1 = arith.constant 0 : index
    %c0_2 = arith.constant 0 : index
    %1 = vector.load %arg0[%c0_1, %c0_2] : memref<64x32xbf16, #tpu.memory_space<vmem>>, vector<64x32xbf16>
    %c0_3 = arith.constant 0 : index
    %c0_4 = arith.constant 0 : index
    %2 = vector.load %arg1[%c0_3, %c0_4] : memref<32x128xbf16, #tpu.memory_space<vmem>>, vector<32x128xbf16>
    %cst = arith.constant dense<0.000000e+00> : vector<64x128xf32>
    %3 = tpu.matmul %1, %2, %cst {dimension_numbers = #tpu.dot_dimension_numbers<[1], [0], [0], [1], [0, 0, 1, 1], [], []>} : vector<64x32xbf16>, vector<32x128xbf16>, vector<64x128xf32> -> vector<64x128xf32>
    %c0_5 = arith.constant 0 : index
    %c0_6 = arith.constant 0 : index
    %4 = vector.load %arg3[%c0_5, %c0_6] : memref<1x128xf32, #tpu.memory_space<vmem>>, vector<1x128xf32>
    %5 = vector.broadcast %4 : vector<1x128xf32> to vector<64x128xf32>
    %6 = arith.addf %3, %5 : vector<64x128xf32>
    %cst_7 = arith.constant 0.000000e+00 : f32
    %7 = vector.broadcast %cst_7 : f32 to vector<8x32xf32>
    %cst_8 = arith.constant 0.000000e+00 : f32
    %8 = vector.broadcast %cst_8 : f32 to vector<8x32xf32>
    %9 = vector.extract_strided_slice %6 {offsets = [0, 0], sizes = [8, 128], strides = [1, 1]} : vector<64x128xf32> to vector<8x128xf32>
    %10 = arith.truncf %7 : vector<8x32xf32> to vector<8x32xbf16>
    %cst_9 = arith.constant dense<0.000000e+00> : vector<8x128xf32>
    %11 = tpu.matmul %10, %0, %cst_9 {dimension_numbers = #tpu.dot_dimension_numbers<[1], [0], [0], [1], [0, 0, 1, 1], [], []>} : vector<8x32xbf16>, vector<32x128xbf16>, vector<8x128xf32> -> vector<8x128xf32>
    %12 = arith.addf %9, %11 : vector<8x128xf32>
    %13 = arith.negf %12 : vector<8x128xf32>
    %14 = math.exp %13 : vector<8x128xf32>
    %cst_10 = arith.constant 1.000000e+00 : f32
    %15 = vector.broadcast %cst_10 : f32 to vector<8x128xf32>
    %16 = arith.addf %15, %14 : vector<8x128xf32>
    %17 = arith.divf %15, %16 : vector<8x128xf32>
    %18 = math.tanh %12 : vector<8x128xf32>
    %19 = vector.extract_strided_slice %17 {offsets = [0, 0], sizes = [8, 32], strides = [1, 1]} : vector<8x128xf32> to vector<8x32xf32>
    %20 = vector.extract_strided_slice %17 {offsets = [0, 32], sizes = [8, 32], strides = [1, 1]} : vector<8x128xf32> to vector<8x32xf32>
    %21 = vector.extract_strided_slice %18 {offsets = [0, 64], sizes = [8, 32], strides = [1, 1]} : vector<8x128xf32> to vector<8x32xf32>
    %22 = vector.extract_strided_slice %17 {offsets = [0, 96], sizes = [8, 32], strides = [1, 1]} : vector<8x128xf32> to vector<8x32xf32>
    %23 = arith.mulf %20, %8 : vector<8x32xf32>
    %24 = arith.mulf %19, %21 : vector<8x32xf32>
    %25 = arith.addf %23, %24 : vector<8x32xf32>
    %26 = math.tanh %25 : vector<8x32xf32>
    %27 = arith.mulf %22, %26 : vector<8x32xf32>
    %28 = vector.extract_strided_slice %6 {offsets = [8, 0], sizes = [8, 128], strides = [1, 1]} : vector<64x128xf32> to vector<8x128xf32>
    %29 = arith.truncf %27 : vector<8x32xf32> to vector<8x32xbf16>
    %cst_11 = arith.constant dense<0.000000e+00> : vector<8x128xf32>
    %30 = tpu.matmul %29, %0, %cst_11 {dimension_numbers = #tpu.dot_dimension_numbers<[1], [0], [0], [1], [0, 0, 1, 1], [], []>} : vector<8x32xbf16>, vector<32x128xbf16>, vector<8x128xf32> -> vector<8x128xf32>
    %31 = arith.addf %28, %30 : vector<8x128xf32>
    %32 = arith.negf %31 : vector<8x128xf32>
    %33 = math.exp %32 : vector<8x128xf32>
    %cst_12 = arith.constant 1.000000e+00 : f32
    %34 = vector.broadcast %cst_12 : f32 to vector<8x128xf32>
    %35 = arith.addf %34, %33 : vector<8x128xf32>
    %36 = arith.divf %34, %35 : vector<8x128xf32>
    %37 = math.tanh %31 : vector<8x128xf32>
    %38 = vector.extract_strided_slice %36 {offsets = [0, 0], sizes = [8, 32], strides = [1, 1]} : vector<8x128xf32> to vector<8x32xf32>
    %39 = vector.extract_strided_slice %36 {offsets = [0, 32], sizes = [8, 32], strides = [1, 1]} : vector<8x128xf32> to vector<8x32xf32>
    %40 = vector.extract_strided_slice %37 {offsets = [0, 64], sizes = [8, 32], strides = [1, 1]} : vector<8x128xf32> to vector<8x32xf32>
    %41 = vector.extract_strided_slice %36 {offsets = [0, 96], sizes = [8, 32], strides = [1, 1]} : vector<8x128xf32> to vector<8x32xf32>
    %42 = arith.mulf %39, %25 : vector<8x32xf32>
    %43 = arith.mulf %38, %40 : vector<8x32xf32>
    %44 = arith.addf %42, %43 : vector<8x32xf32>
    %45 = math.tanh %44 : vector<8x32xf32>
    %46 = arith.mulf %41, %45 : vector<8x32xf32>
    %47 = vector.extract_strided_slice %6 {offsets = [16, 0], sizes = [8, 128], strides = [1, 1]} : vector<64x128xf32> to vector<8x128xf32>
    %48 = arith.truncf %46 : vector<8x32xf32> to vector<8x32xbf16>
    %cst_13 = arith.constant dense<0.000000e+00> : vector<8x128xf32>
    %49 = tpu.matmul %48, %0, %cst_13 {dimension_numbers = #tpu.dot_dimension_numbers<[1], [0], [0], [1], [0, 0, 1, 1], [], []>} : vector<8x32xbf16>, vector<32x128xbf16>, vector<8x128xf32> -> vector<8x128xf32>
    %50 = arith.addf %47, %49 : vector<8x128xf32>
    %51 = arith.negf %50 : vector<8x128xf32>
    %52 = math.exp %51 : vector<8x128xf32>
    %cst_14 = arith.constant 1.000000e+00 : f32
    %53 = vector.broadcast %cst_14 : f32 to vector<8x128xf32>
    %54 = arith.addf %53, %52 : vector<8x128xf32>
    %55 = arith.divf %53, %54 : vector<8x128xf32>
    %56 = math.tanh %50 : vector<8x128xf32>
    %57 = vector.extract_strided_slice %55 {offsets = [0, 0], sizes = [8, 32], strides = [1, 1]} : vector<8x128xf32> to vector<8x32xf32>
    %58 = vector.extract_strided_slice %55 {offsets = [0, 32], sizes = [8, 32], strides = [1, 1]} : vector<8x128xf32> to vector<8x32xf32>
    %59 = vector.extract_strided_slice %56 {offsets = [0, 64], sizes = [8, 32], strides = [1, 1]} : vector<8x128xf32> to vector<8x32xf32>
    %60 = vector.extract_strided_slice %55 {offsets = [0, 96], sizes = [8, 32], strides = [1, 1]} : vector<8x128xf32> to vector<8x32xf32>
    %61 = arith.mulf %58, %44 : vector<8x32xf32>
    %62 = arith.mulf %57, %59 : vector<8x32xf32>
    %63 = arith.addf %61, %62 : vector<8x32xf32>
    %64 = math.tanh %63 : vector<8x32xf32>
    %65 = arith.mulf %60, %64 : vector<8x32xf32>
    %66 = vector.extract_strided_slice %6 {offsets = [24, 0], sizes = [8, 128], strides = [1, 1]} : vector<64x128xf32> to vector<8x128xf32>
    %67 = arith.truncf %65 : vector<8x32xf32> to vector<8x32xbf16>
    %cst_15 = arith.constant dense<0.000000e+00> : vector<8x128xf32>
    %68 = tpu.matmul %67, %0, %cst_15 {dimension_numbers = #tpu.dot_dimension_numbers<[1], [0], [0], [1], [0, 0, 1, 1], [], []>} : vector<8x32xbf16>, vector<32x128xbf16>, vector<8x128xf32> -> vector<8x128xf32>
    %69 = arith.addf %66, %68 : vector<8x128xf32>
    %70 = arith.negf %69 : vector<8x128xf32>
    %71 = math.exp %70 : vector<8x128xf32>
    %cst_16 = arith.constant 1.000000e+00 : f32
    %72 = vector.broadcast %cst_16 : f32 to vector<8x128xf32>
    %73 = arith.addf %72, %71 : vector<8x128xf32>
    %74 = arith.divf %72, %73 : vector<8x128xf32>
    %75 = math.tanh %69 : vector<8x128xf32>
    %76 = vector.extract_strided_slice %74 {offsets = [0, 0], sizes = [8, 32], strides = [1, 1]} : vector<8x128xf32> to vector<8x32xf32>
    %77 = vector.extract_strided_slice %74 {offsets = [0, 32], sizes = [8, 32], strides = [1, 1]} : vector<8x128xf32> to vector<8x32xf32>
    %78 = vector.extract_strided_slice %75 {offsets = [0, 64], sizes = [8, 32], strides = [1, 1]} : vector<8x128xf32> to vector<8x32xf32>
    %79 = vector.extract_strided_slice %74 {offsets = [0, 96], sizes = [8, 32], strides = [1, 1]} : vector<8x128xf32> to vector<8x32xf32>
    %80 = arith.mulf %77, %63 : vector<8x32xf32>
    %81 = arith.mulf %76, %78 : vector<8x32xf32>
    %82 = arith.addf %80, %81 : vector<8x32xf32>
    %83 = math.tanh %82 : vector<8x32xf32>
    %84 = arith.mulf %79, %83 : vector<8x32xf32>
    %85 = vector.extract_strided_slice %6 {offsets = [32, 0], sizes = [8, 128], strides = [1, 1]} : vector<64x128xf32> to vector<8x128xf32>
    %86 = arith.truncf %84 : vector<8x32xf32> to vector<8x32xbf16>
    %cst_17 = arith.constant dense<0.000000e+00> : vector<8x128xf32>
    %87 = tpu.matmul %86, %0, %cst_17 {dimension_numbers = #tpu.dot_dimension_numbers<[1], [0], [0], [1], [0, 0, 1, 1], [], []>} : vector<8x32xbf16>, vector<32x128xbf16>, vector<8x128xf32> -> vector<8x128xf32>
    %88 = arith.addf %85, %87 : vector<8x128xf32>
    %89 = arith.negf %88 : vector<8x128xf32>
    %90 = math.exp %89 : vector<8x128xf32>
    %cst_18 = arith.constant 1.000000e+00 : f32
    %91 = vector.broadcast %cst_18 : f32 to vector<8x128xf32>
    %92 = arith.addf %91, %90 : vector<8x128xf32>
    %93 = arith.divf %91, %92 : vector<8x128xf32>
    %94 = math.tanh %88 : vector<8x128xf32>
    %95 = vector.extract_strided_slice %93 {offsets = [0, 0], sizes = [8, 32], strides = [1, 1]} : vector<8x128xf32> to vector<8x32xf32>
    %96 = vector.extract_strided_slice %93 {offsets = [0, 32], sizes = [8, 32], strides = [1, 1]} : vector<8x128xf32> to vector<8x32xf32>
    %97 = vector.extract_strided_slice %94 {offsets = [0, 64], sizes = [8, 32], strides = [1, 1]} : vector<8x128xf32> to vector<8x32xf32>
    %98 = vector.extract_strided_slice %93 {offsets = [0, 96], sizes = [8, 32], strides = [1, 1]} : vector<8x128xf32> to vector<8x32xf32>
    %99 = arith.mulf %96, %82 : vector<8x32xf32>
    %100 = arith.mulf %95, %97 : vector<8x32xf32>
    %101 = arith.addf %99, %100 : vector<8x32xf32>
    %102 = math.tanh %101 : vector<8x32xf32>
    %103 = arith.mulf %98, %102 : vector<8x32xf32>
    %104 = vector.extract_strided_slice %6 {offsets = [40, 0], sizes = [8, 128], strides = [1, 1]} : vector<64x128xf32> to vector<8x128xf32>
    %105 = arith.truncf %103 : vector<8x32xf32> to vector<8x32xbf16>
    %cst_19 = arith.constant dense<0.000000e+00> : vector<8x128xf32>
    %106 = tpu.matmul %105, %0, %cst_19 {dimension_numbers = #tpu.dot_dimension_numbers<[1], [0], [0], [1], [0, 0, 1, 1], [], []>} : vector<8x32xbf16>, vector<32x128xbf16>, vector<8x128xf32> -> vector<8x128xf32>
    %107 = arith.addf %104, %106 : vector<8x128xf32>
    %108 = arith.negf %107 : vector<8x128xf32>
    %109 = math.exp %108 : vector<8x128xf32>
    %cst_20 = arith.constant 1.000000e+00 : f32
    %110 = vector.broadcast %cst_20 : f32 to vector<8x128xf32>
    %111 = arith.addf %110, %109 : vector<8x128xf32>
    %112 = arith.divf %110, %111 : vector<8x128xf32>
    %113 = math.tanh %107 : vector<8x128xf32>
    %114 = vector.extract_strided_slice %112 {offsets = [0, 0], sizes = [8, 32], strides = [1, 1]} : vector<8x128xf32> to vector<8x32xf32>
    %115 = vector.extract_strided_slice %112 {offsets = [0, 32], sizes = [8, 32], strides = [1, 1]} : vector<8x128xf32> to vector<8x32xf32>
    %116 = vector.extract_strided_slice %113 {offsets = [0, 64], sizes = [8, 32], strides = [1, 1]} : vector<8x128xf32> to vector<8x32xf32>
    %117 = vector.extract_strided_slice %112 {offsets = [0, 96], sizes = [8, 32], strides = [1, 1]} : vector<8x128xf32> to vector<8x32xf32>
    %118 = arith.mulf %115, %101 : vector<8x32xf32>
    %119 = arith.mulf %114, %116 : vector<8x32xf32>
    %120 = arith.addf %118, %119 : vector<8x32xf32>
    %121 = math.tanh %120 : vector<8x32xf32>
    %122 = arith.mulf %117, %121 : vector<8x32xf32>
    %123 = vector.extract_strided_slice %6 {offsets = [48, 0], sizes = [8, 128], strides = [1, 1]} : vector<64x128xf32> to vector<8x128xf32>
    %124 = arith.truncf %122 : vector<8x32xf32> to vector<8x32xbf16>
    %cst_21 = arith.constant dense<0.000000e+00> : vector<8x128xf32>
    %125 = tpu.matmul %124, %0, %cst_21 {dimension_numbers = #tpu.dot_dimension_numbers<[1], [0], [0], [1], [0, 0, 1, 1], [], []>} : vector<8x32xbf16>, vector<32x128xbf16>, vector<8x128xf32> -> vector<8x128xf32>
    %126 = arith.addf %123, %125 : vector<8x128xf32>
    %127 = arith.negf %126 : vector<8x128xf32>
    %128 = math.exp %127 : vector<8x128xf32>
    %cst_22 = arith.constant 1.000000e+00 : f32
    %129 = vector.broadcast %cst_22 : f32 to vector<8x128xf32>
    %130 = arith.addf %129, %128 : vector<8x128xf32>
    %131 = arith.divf %129, %130 : vector<8x128xf32>
    %132 = math.tanh %126 : vector<8x128xf32>
    %133 = vector.extract_strided_slice %131 {offsets = [0, 0], sizes = [8, 32], strides = [1, 1]} : vector<8x128xf32> to vector<8x32xf32>
    %134 = vector.extract_strided_slice %131 {offsets = [0, 32], sizes = [8, 32], strides = [1, 1]} : vector<8x128xf32> to vector<8x32xf32>
    %135 = vector.extract_strided_slice %132 {offsets = [0, 64], sizes = [8, 32], strides = [1, 1]} : vector<8x128xf32> to vector<8x32xf32>
    %136 = vector.extract_strided_slice %131 {offsets = [0, 96], sizes = [8, 32], strides = [1, 1]} : vector<8x128xf32> to vector<8x32xf32>
    %137 = arith.mulf %134, %120 : vector<8x32xf32>
    %138 = arith.mulf %133, %135 : vector<8x32xf32>
    %139 = arith.addf %137, %138 : vector<8x32xf32>
    %140 = math.tanh %139 : vector<8x32xf32>
    %141 = arith.mulf %136, %140 : vector<8x32xf32>
    %142 = vector.extract_strided_slice %6 {offsets = [56, 0], sizes = [8, 128], strides = [1, 1]} : vector<64x128xf32> to vector<8x128xf32>
    %143 = arith.truncf %141 : vector<8x32xf32> to vector<8x32xbf16>
    %cst_23 = arith.constant dense<0.000000e+00> : vector<8x128xf32>
    %144 = tpu.matmul %143, %0, %cst_23 {dimension_numbers = #tpu.dot_dimension_numbers<[1], [0], [0], [1], [0, 0, 1, 1], [], []>} : vector<8x32xbf16>, vector<32x128xbf16>, vector<8x128xf32> -> vector<8x128xf32>
    %145 = arith.addf %142, %144 : vector<8x128xf32>
    %146 = arith.negf %145 : vector<8x128xf32>
    %147 = math.exp %146 : vector<8x128xf32>
    %cst_24 = arith.constant 1.000000e+00 : f32
    %148 = vector.broadcast %cst_24 : f32 to vector<8x128xf32>
    %149 = arith.addf %148, %147 : vector<8x128xf32>
    %150 = arith.divf %148, %149 : vector<8x128xf32>
    %151 = math.tanh %145 : vector<8x128xf32>
    %152 = vector.extract_strided_slice %150 {offsets = [0, 0], sizes = [8, 32], strides = [1, 1]} : vector<8x128xf32> to vector<8x32xf32>
    %153 = vector.extract_strided_slice %150 {offsets = [0, 32], sizes = [8, 32], strides = [1, 1]} : vector<8x128xf32> to vector<8x32xf32>
    %154 = vector.extract_strided_slice %151 {offsets = [0, 64], sizes = [8, 32], strides = [1, 1]} : vector<8x128xf32> to vector<8x32xf32>
    %155 = vector.extract_strided_slice %150 {offsets = [0, 96], sizes = [8, 32], strides = [1, 1]} : vector<8x128xf32> to vector<8x32xf32>
    %156 = arith.mulf %153, %139 : vector<8x32xf32>
    %157 = arith.mulf %152, %154 : vector<8x32xf32>
    %158 = arith.addf %156, %157 : vector<8x32xf32>
    %159 = math.tanh %158 : vector<8x32xf32>
    %160 = arith.mulf %155, %159 : vector<8x32xf32>
    %161 = tpu.concatenate %27, %46, %65, %84, %103, %122, %141, %160 in 0 : vector<8x32xf32>, vector<8x32xf32>, vector<8x32xf32>, vector<8x32xf32>, vector<8x32xf32>, vector<8x32xf32>, vector<8x32xf32>, vector<8x32xf32> -> vector<64x32xf32>
    %162 = arith.truncf %161 : vector<64x32xf32> to vector<64x32xbf16>
    %c0_25 = arith.constant 0 : index
    %c0_26 = arith.constant 0 : index
    %163 = vector.load %arg4[%c0_25, %c0_26] : memref<64x32xbf16, #tpu.memory_space<vmem>>, vector<64x32xbf16>
    tpu.vector_store %arg4[%c0_25, %c0_26], %162 {strides = array<i32>} : memref<64x32xbf16, #tpu.memory_space<vmem>>, vector<64x32xbf16>,
    return
  }
}

</mosaic_0001>

<llo_original>
// kernel: tpu_custom_call.1
$region0: #{tpu_custom_call.1}
  #allocation0 [shape = 'u32[]', space=smem, size = 0x4, offset = 0x4, fixed_abs, tag = 'smem constant byte address 0x4 - core index']
  #allocation1 [shape = 'u32[72,128]{1,0:T(1,128)}', space=vmem, size = 0x9000, scoped, tag = 'internal scratch']
  %s0 = inlined_call_operand.vmem [shape: bf16[64,32], index: 0, kind: input, shape index: {}]
  %s1 = inlined_call_operand.vmem [shape: bf16[32,128], index: 1, kind: input, shape index: {}]
  %s2 = inlined_call_operand.vmem [shape: bf16[32,128], index: 2, kind: input, shape index: {}]
  %s3 = inlined_call_operand.vmem [shape: f32[1,128], index: 3, kind: input, shape index: {}]
  %s4 = inlined_call_operand.vmem [shape: bf16[64,32], index: 4, kind: output, shape index: {}]
  %s5 = sld [smem:[#allocation0]]
  $region26: #{tpu_custom_call.1} parent=0
    _
  %s7 = ssub.s32 1, %s5
  %s8 = scalar_select 0, %s7, %s5
  // Predicated region
  $region2: #{tpu_custom_call.1} parent=0 // pred_check
    _
  $region3: #{tpu_custom_call.1} parent=0 // pred_check_branch
    %10 = sbr.rel (0) target = $region5
  $region4: #{tpu_custom_call.1} parent=0 // pred_region
    _
  $region5: #{tpu_custom_call.1} parent=0 // pred_fallthru
    _
  // Predicated region
  $region6: #{tpu_custom_call.1} parent=0 // pred_check
    _
  $region7: #{tpu_custom_call.1} parent=0 // pred_check_branch
    %12 = sbr.rel (0) target = $region9
  $region8: #{tpu_custom_call.1} parent=0 // pred_region
    _
  $region9: #{tpu_custom_call.1} parent=0 // pred_fallthru
    _
  // Predicated region
  $region10: #{tpu_custom_call.1} parent=0 // pred_check
    _
  $region11: #{tpu_custom_call.1} parent=0 // pred_check_branch
    %14 = sbr.rel (0) target = $region13
  $region12: #{tpu_custom_call.1} parent=0 // pred_region
    _
  $region13: #{tpu_custom_call.1} parent=0 // pred_fallthru
    _
  // Predicated region
  $region14: #{tpu_custom_call.1} parent=0 // pred_check
    _
  $region15: #{tpu_custom_call.1} parent=0 // pred_check_branch
    %16 = sbr.rel (0) target = $region17
  $region16: #{tpu_custom_call.1} parent=0 // pred_region
    _
  $region17: #{tpu_custom_call.1} parent=0 // pred_fallthru
    _
  %v18 = vld [vmem:[%s2] sm:$0xf]
  %v19 = vld [vmem:[%s2 + $0x4] sm:$0xf]
  %v20 = vld [vmem:[%s2 + $0x8] sm:$0xf]
  %v21 = vld [vmem:[%s2 + $0xc] sm:$0xf]
  %v22 = vld [vmem:[%s0] sm:$0xf]
  %v23 = vld [vmem:[%s0 + $0x4] sm:$0xf]
  %v24 = vld [vmem:[%s0 + $0x8] sm:$0xf]
  %v25 = vld [vmem:[%s0 + $0xc] sm:$0xf]
  %v26 = vld [vmem:[%s0 + $0x10] sm:$0xf]
  %v27 = vld [vmem:[%s0 + $0x14] sm:$0xf]
  %v28 = vld [vmem:[%s0 + $0x18] sm:$0xf]
  %v29 = vld [vmem:[%s0 + $0x1c] sm:$0xf]
  %v30 = vld [vmem:[%s1] sm:$0xf]
  %v31 = vld [vmem:[%s1 + $0x4] sm:$0xf]
  %v32 = vld [vmem:[%s1 + $0x8] sm:$0xf]
  %v33 = vld [vmem:[%s1 + $0xc] sm:$0xf]
  %v34 = vld [vmem:[%s3] sm:$0x1]
  %v36 = vperm.slane %v34, 0
  %v46 = vunpack.c.l.b16 %v22
  %v47 = vunpack.c.l.b16 %v23
  %v48 = vunpack.c.l.b16 %v24
  %v49 = vunpack.c.l.b16 %v25
  %v50 = vunpack.c.l.b16 %v26
  %v51 = vunpack.c.l.b16 %v27
  %v52 = vunpack.c.l.b16 %v28
  %v53 = vunpack.c.l.b16 %v29
  %v54 = vpack.c.b16 %v47, %v46
  %v55 = vpack.c.b16 %v49, %v48
  %v56 = vpack.c.b16 %v51, %v50
  %v57 = vpack.c.b16 %v53, %v52
  %v62 = vunpack.c.l.b16 %v30
  %v63 = vunpack.c.l.b16 %v31
  %v64 = vunpack.c.l.b16 %v32
  %v65 = vunpack.c.l.b16 %v33
  %v66 = vpack.c.b16 %v63, %v62
  %v67 = vpack.c.b16 %v65, %v64
  %vm70 = vcmask 261120
  %v72 = vsel %vm70, %v54, 0
  %v75 = vsel %vm70, %v55, 0
  %v78 = vsel %vm70, %v56, 0
  %v81 = vsel %vm70, %v57, 0
  %83 = vmatpush.bf16.msra.mxu0 0
  %84 = vmatpush.bf16.msra.mxu0 0
  %85 = vmatpush.bf16.msra.mxu0 0
  %86 = vmatpush.bf16.msra.mxu0 0
  %87 = vmatpush.bf16.msra.mxu0 0
  %88 = vmatpush.bf16.msra.mxu0 0
  %89 = vmatpush.bf16.msra.mxu0 %v67
  %90 = vmatpush.bf16.msra.mxu0 %v66
  %91 = vmatmul.bf16.gmra.mxu0 %v72
  %v92 = vpop.f32.mrf.mxu0
  %v93 = vadd.f32 %v36, %v92
  %v94 = vpop.f32.mrf.mxu0
  %v95 = vadd.f32 %v36, %v94
  %96 = vmatmul.bf16.gmra.mxu0 %v75
  %v97 = vpop.f32.mrf.mxu0
  %v98 = vadd.f32 %v36, %v97
  %v99 = vpop.f32.mrf.mxu0
  %v100 = vadd.f32 %v36, %v99
  %101 = vmatmul.bf16.gmra.mxu0 %v78
  %v102 = vpop.f32.mrf.mxu0
  %v103 = vadd.f32 %v36, %v102
  %v104 = vpop.f32.mrf.mxu0
  %v105 = vadd.f32 %v36, %v104
  %106 = vmatmul.bf16.gmra.mxu0 %v81
  %v107 = vpop.f32.mrf.mxu0
  %v108 = vadd.f32 %v36, %v107
  %v109 = vpop.f32.mrf.mxu0
  %v110 = vadd.f32 %v36, %v109
  %111 = vdwg.mxu0
  %v116 = vunpack.c.l.b16 %v18
  %v117 = vunpack.c.l.b16 %v19
  %v118 = vunpack.c.l.b16 %v20
  %v119 = vunpack.c.l.b16 %v21
  %v120 = vpack.c.b16 %v117, %v116
  %v121 = vpack.c.b16 %v119, %v118
  %v125 = vsel %vm70, 0, 0
  %127 = vmatpush.bf16.msra.mxu0 0
  %128 = vmatpush.bf16.msra.mxu0 0
  %129 = vmatpush.bf16.msra.mxu0 0
  %130 = vmatpush.bf16.msra.mxu0 0
  %131 = vmatpush.bf16.msra.mxu0 0
  %132 = vmatpush.bf16.msra.mxu0 0
  %133 = vmatpush.bf16.msra.mxu0 %v121
  %134 = vmatpush.bf16.msra.mxu0 %v120
  %135 = vmatmul.bf16.gmra.mxu0 %v125
  %v136 = vpop.f32.mrf.mxu0
  %v137 = vadd.f32 0.0, %v136
  %v138 = vpop.f32.mrf.mxu0
  %139 = vdwg.mxu0
  %v140 = vadd.f32 %v93, %v137
  %v141 = vxor.u32 %v140, 2147483648
  %v142 = vmul.f32 %v141, 1.442695
  %v143 = vpow.pop %v142
  %v144 = vadd.f32 %v143, 1.0
  %v145 = vrcp.pop %v144
  %v146 = vmul.f32 %v144, %v145
  %v147 = vsub.f32 1.0, %v146
  %v148 = vmul.f32 %v145, %v147
  %v149 = vadd.f32 %v145, %v148
  %vm150 = vweird.f32 %v144
  %vm151 = vweird.f32 %v145
  %vm152 = vmor %vm150, %vm151
  %v153 = vsel %vm152, %v145, %v149
  %v154 = vand.u32 2147483647, %v144
  %vm155 = vcmp.eq.f32.partialorder %v154, 8.507059e+37
  %v156 = vand.u32 %v144, 2147483648
  %v157 = vor.u32 1.1754944e-38, %v156
  %v158 = vsel %vm155, %v157, %v153
  %v159 = vmul.f32 1.0, %v158
  %v160 = vtanh.pop %v140
  %v161 = vmul.f32 %v159, 0.0
  %163 = vrot.lane.b32.xlu0 %v160, 64
  %v164 = vpop.permute.xlu0 %163
  %v166 = vmul.f32 %v159, %v164
  %168 = vrot.lane.b32.xlu0 %v166, 32
  %v169 = vpop.permute.xlu0 %168
  %v171 = vadd.f32 %v161, %v169
  %v172 = vtanh.pop %v171
  %174 = vrot.lane.b32.xlu0 %v172, 64
  %v175 = vpop.permute.xlu0 %174
  %v177 = vmul.f32 %v159, %v175
  %v178 = vpack.c.bf16 %v177, %v177
  %180 = vrot.lane.b32.xlu0 %v178, 32
  %v181 = vpop.permute.xlu0 %180
  %v183 = vsel %vm70, %v181, 0
  %185 = vmatpush.bf16.msra.mxu0 0
  %186 = vmatpush.bf16.msra.mxu0 0
  %187 = vmatpush.bf16.msra.mxu0 0
  %188 = vmatpush.bf16.msra.mxu0 0
  %189 = vmatpush.bf16.msra.mxu0 0
  %190 = vmatpush.bf16.msra.mxu0 0
  %191 = vmatpush.bf16.msra.mxu0 %v121
  %192 = vmatpush.bf16.msra.mxu0 %v120
  %193 = vmatmul.bf16.gmra.mxu0 %v183
  %v194 = vpop.f32.mrf.mxu0
  %v195 = vadd.f32 0.0, %v194
  %v196 = vpop.f32.mrf.mxu0
  %197 = vdwg.mxu0
  %v198 = vadd.f32 %v95, %v195
  %v199 = vxor.u32 %v198, 2147483648
  %v200 = vmul.f32 %v199, 1.442695
  %v201 = vpow.pop %v200
  %v202 = vadd.f32 %v201, 1.0
  %v203 = vrcp.pop %v202
  %v204 = vmul.f32 %v202, %v203
  %v205 = vsub.f32 1.0, %v204
  %v206 = vmul.f32 %v203, %v205
  %v207 = vadd.f32 %v203, %v206
  %vm208 = vweird.f32 %v202
  %vm209 = vweird.f32 %v203
  %vm210 = vmor %vm208, %vm209
  %v211 = vsel %vm210, %v203, %v207
  %v212 = vand.u32 2147483647, %v202
  %vm213 = vcmp.eq.f32.partialorder %v212, 8.507059e+37
  %v214 = vand.u32 %v202, 2147483648
  %v215 = vor.u32 1.1754944e-38, %v214
  %v216 = vsel %vm213, %v215, %v211
  %v217 = vmul.f32 1.0, %v216
  %v218 = vtanh.pop %v198
  %v219 = vmul.f32 %v217, %v171
  %221 = vrot.lane.b32.xlu0 %v218, 64
  %v222 = vpop.permute.xlu0 %221
  %v224 = vmul.f32 %v217, %v222
  %226 = vrot.lane.b32.xlu0 %v224, 32
  %v227 = vpop.permute.xlu0 %226
  %v229 = vadd.f32 %v219, %v227
  %v230 = vtanh.pop %v229
  %232 = vrot.lane.b32.xlu0 %v230, 64
  %v233 = vpop.permute.xlu0 %232
  %v235 = vmul.f32 %v217, %v233
  %v236 = vpack.c.bf16 %v235, %v235
  %238 = vrot.lane.b32.xlu0 %v236, 32
  %v239 = vpop.permute.xlu0 %238
  %v241 = vsel %vm70, %v239, 0
  %243 = vmatpush.bf16.msra.mxu0 0
  %244 = vmatpush.bf16.msra.mxu0 0
  %245 = vmatpush.bf16.msra.mxu0 0
  %246 = vmatpush.bf16.msra.mxu0 0
  %247 = vmatpush.bf16.msra.mxu0 0
  %248 = vmatpush.bf16.msra.mxu0 0
  %249 = vmatpush.bf16.msra.mxu0 %v121
  %250 = vmatpush.bf16.msra.mxu0 %v120
  %251 = vmatmul.bf16.gmra.mxu0 %v241
  %v252 = vpop.f32.mrf.mxu0
  %v253 = vadd.f32 0.0, %v252
  %v254 = vpop.f32.mrf.mxu0
  %255 = vdwg.mxu0
  %v256 = vadd.f32 %v98, %v253
  %v257 = vxor.u32 %v256, 2147483648
  %v258 = vmul.f32 %v257, 1.442695
  %v259 = vpow.pop %v258
  %v260 = vadd.f32 %v259, 1.0
  %v261 = vrcp.pop %v260
  %v262 = vmul.f32 %v260, %v261
  %v263 = vsub.f32 1.0, %v262
  %v264 = vmul.f32 %v261, %v263
  %v265 = vadd.f32 %v261, %v264
  %vm266 = vweird.f32 %v260
  %vm267 = vweird.f32 %v261
  %vm268 = vmor %vm266, %vm267
  %v269 = vsel %vm268, %v261, %v265
  %v270 = vand.u32 2147483647, %v260
  %vm271 = vcmp.eq.f32.partialorder %v270, 8.507059e+37
  %v272 = vand.u32 %v260, 2147483648
  %v273 = vor.u32 1.1754944e-38, %v272
  %v274 = vsel %vm271, %v273, %v269
  %v275 = vmul.f32 1.0, %v274
  %v276 = vtanh.pop %v256
  %v277 = vmul.f32 %v275, %v229
  %279 = vrot.lane.b32.xlu0 %v276, 64
  %v280 = vpop.permute.xlu0 %279
  %v282 = vmul.f32 %v275, %v280
  %284 = vrot.lane.b32.xlu0 %v282, 32
  %v285 = vpop.permute.xlu0 %284
  %v287 = vadd.f32 %v277, %v285
  %v288 = vtanh.pop %v287
  %290 = vrot.lane.b32.xlu0 %v288, 64
  %v291 = vpop.permute.xlu0 %290
  %v293 = vmul.f32 %v275, %v291
  %v294 = vpack.c.bf16 %v293, %v293
  %296 = vrot.lane.b32.xlu0 %v294, 32
  %v297 = vpop.permute.xlu0 %296
  %v299 = vsel %vm70, %v297, 0
  %301 = vmatpush.bf16.msra.mxu0 0
  %302 = vmatpush.bf16.msra.mxu0 0
  %303 = vmatpush.bf16.msra.mxu0 0
  %304 = vmatpush.bf16.msra.mxu0 0
  %305 = vmatpush.bf16.msra.mxu0 0
  %306 = vmatpush.bf16.msra.mxu0 0
  %307 = vmatpush.bf16.msra.mxu0 %v121
  %308 = vmatpush.bf16.msra.mxu0 %v120
  %309 = vmatmul.bf16.gmra.mxu0 %v299
  %v310 = vpop.f32.mrf.mxu0
  %v311 = vadd.f32 0.0, %v310
  %v312 = vpop.f32.mrf.mxu0
  %313 = vdwg.mxu0
  %v314 = vadd.f32 %v100, %v311
  %v315 = vxor.u32 %v314, 2147483648
  %v316 = vmul.f32 %v315, 1.442695
  %v317 = vpow.pop %v316
  %v318 = vadd.f32 %v317, 1.0
  %v319 = vrcp.pop %v318
  %v320 = vmul.f32 %v318, %v319
  %v321 = vsub.f32 1.0, %v320
  %v322 = vmul.f32 %v319, %v321
  %v323 = vadd.f32 %v319, %v322
  %vm324 = vweird.f32 %v318
  %vm325 = vweird.f32 %v319
  %vm326 = vmor %vm324, %vm325
  %v327 = vsel %vm326, %v319, %v323
  %v328 = vand.u32 2147483647, %v318
  %vm329 = vcmp.eq.f32.partialorder %v328, 8.507059e+37
  %v330 = vand.u32 %v318, 2147483648
  %v331 = vor.u32 1.1754944e-38, %v330
  %v332 = vsel %vm329, %v331, %v327
  %v333 = vmul.f32 1.0, %v332
  %v334 = vtanh.pop %v314
  %v335 = vmul.f32 %v333, %v287
  %337 = vrot.lane.b32.xlu0 %v334, 64
  %v338 = vpop.permute.xlu0 %337
  %v340 = vmul.f32 %v333, %v338
  %342 = vrot.lane.b32.xlu0 %v340, 32
  %v343 = vpop.permute.xlu0 %342
  %v345 = vadd.f32 %v335, %v343
  %v346 = vtanh.pop %v345
  %348 = vrot.lane.b32.xlu0 %v346, 64
  %v349 = vpop.permute.xlu0 %348
  %v351 = vmul.f32 %v333, %v349
  %v352 = vpack.c.bf16 %v351, %v351
  %354 = vrot.lane.b32.xlu0 %v352, 32
  %v355 = vpop.permute.xlu0 %354
  %v357 = vsel %vm70, %v355, 0
  %359 = vmatpush.bf16.msra.mxu0 0
  %360 = vmatpush.bf16.msra.mxu0 0
  %361 = vmatpush.bf16.msra.mxu0 0
  %362 = vmatpush.bf16.msra.mxu0 0
  %363 = vmatpush.bf16.msra.mxu0 0
  %364 = vmatpush.bf16.msra.mxu0 0
  %365 = vmatpush.bf16.msra.mxu0 %v121
  %366 = vmatpush.bf16.msra.mxu0 %v120
  %367 = vmatmul.bf16.gmra.mxu0 %v357
  %v368 = vpop.f32.mrf.mxu0
  %v369 = vadd.f32 0.0, %v368
  %v370 = vpop.f32.mrf.mxu0
  %371 = vdwg.mxu0
  %v372 = vadd.f32 %v103, %v369
  %v373 = vxor.u32 %v372, 2147483648
  %v374 = vmul.f32 %v373, 1.442695
  %v375 = vpow.pop %v374
  %v376 = vadd.f32 %v375, 1.0
  %v377 = vrcp.pop %v376
  %v378 = vmul.f32 %v376, %v377
  %v379 = vsub.f32 1.0, %v378
  %v380 = vmul.f32 %v377, %v379
  %v381 = vadd.f32 %v377, %v380
  %vm382 = vweird.f32 %v376
  %vm383 = vweird.f32 %v377
  %vm384 = vmor %vm382, %vm383
  %v385 = vsel %vm384, %v377, %v381
  %v386 = vand.u32 2147483647, %v376
  %vm387 = vcmp.eq.f32.partialorder %v386, 8.507059e+37
  %v388 = vand.u32 %v376, 2147483648
  %v389 = vor.u32 1.1754944e-38, %v388
  %v390 = vsel %vm387, %v389, %v385
  %v391 = vmul.f32 1.0, %v390
  %v392 = vtanh.pop %v372
  %v393 = vmul.f32 %v391, %v345
  %395 = vrot.lane.b32.xlu0 %v392, 64
  %v396 = vpop.permute.xlu0 %395
  %v398 = vmul.f32 %v391, %v396
  %400 = vrot.lane.b32.xlu0 %v398, 32
  %v401 = vpop.permute.xlu0 %400
  %v403 = vadd.f32 %v393, %v401
  %v404 = vtanh.pop %v403
  %406 = vrot.lane.b32.xlu0 %v404, 64
  %v407 = vpop.permute.xlu0 %406
  %v409 = vmul.f32 %v391, %v407
  %v410 = vpack.c.bf16 %v409, %v409
  %412 = vrot.lane.b32.xlu0 %v410, 32
  %v413 = vpop.permute.xlu0 %412
  %v415 = vsel %vm70, %v413, 0
  %417 = vmatpush.bf16.msra.mxu0 0
  %418 = vmatpush.bf16.msra.mxu0 0
  %419 = vmatpush.bf16.msra.mxu0 0
  %420 = vmatpush.bf16.msra.mxu0 0
  %421 = vmatpush.bf16.msra.mxu0 0
  %422 = vmatpush.bf16.msra.mxu0 0
  %423 = vmatpush.bf16.msra.mxu0 %v121
  %424 = vmatpush.bf16.msra.mxu0 %v120
  %425 = vmatmul.bf16.gmra.mxu0 %v415
  %v426 = vpop.f32.mrf.mxu0
  %v427 = vadd.f32 0.0, %v426
  %v428 = vpop.f32.mrf.mxu0
  %429 = vdwg.mxu0
  %v430 = vadd.f32 %v105, %v427
  %v431 = vxor.u32 %v430, 2147483648
  %v432 = vmul.f32 %v431, 1.442695
  %v433 = vpow.pop %v432
  %v434 = vadd.f32 %v433, 1.0
  %v435 = vrcp.pop %v434
  %v436 = vmul.f32 %v434, %v435
  %v437 = vsub.f32 1.0, %v436
  %v438 = vmul.f32 %v435, %v437
  %v439 = vadd.f32 %v435, %v438
  %vm440 = vweird.f32 %v434
  %vm441 = vweird.f32 %v435
  %vm442 = vmor %vm440, %vm441
  %v443 = vsel %vm442, %v435, %v439
  %v444 = vand.u32 2147483647, %v434
  %vm445 = vcmp.eq.f32.partialorder %v444, 8.507059e+37
  %v446 = vand.u32 %v434, 2147483648
  %v447 = vor.u32 1.1754944e-38, %v446
  %v448 = vsel %vm445, %v447, %v443
  %v449 = vmul.f32 1.0, %v448
  %v450 = vtanh.pop %v430
  %v451 = vmul.f32 %v449, %v403
  %453 = vrot.lane.b32.xlu0 %v450, 64
  %v454 = vpop.permute.xlu0 %453
  %v456 = vmul.f32 %v449, %v454
  %458 = vrot.lane.b32.xlu0 %v456, 32
  %v459 = vpop.permute.xlu0 %458
  %v461 = vadd.f32 %v451, %v459
  %v462 = vtanh.pop %v461
  %464 = vrot.lane.b32.xlu0 %v462, 64
  %v465 = vpop.permute.xlu0 %464
  %v467 = vmul.f32 %v449, %v465
  %v468 = vpack.c.bf16 %v467, %v467
  %470 = vrot.lane.b32.xlu0 %v468, 32
  %v471 = vpop.permute.xlu0 %470
  %v473 = vsel %vm70, %v471, 0
  %475 = vmatpush.bf16.msra.mxu0 0
  %476 = vmatpush.bf16.msra.mxu0 0
  %477 = vmatpush.bf16.msra.mxu0 0
  %478 = vmatpush.bf16.msra.mxu0 0
  %479 = vmatpush.bf16.msra.mxu0 0
  %480 = vmatpush.bf16.msra.mxu0 0
  %481 = vmatpush.bf16.msra.mxu0 %v121
  %482 = vmatpush.bf16.msra.mxu0 %v120
  %483 = vmatmul.bf16.gmra.mxu0 %v473
  %v484 = vpop.f32.mrf.mxu0
  %v485 = vadd.f32 0.0, %v484
  %v486 = vpop.f32.mrf.mxu0
  %487 = vdwg.mxu0
  %v488 = vadd.f32 %v108, %v485
  %v489 = vxor.u32 %v488, 2147483648
  %v490 = vmul.f32 %v489, 1.442695
  %v491 = vpow.pop %v490
  %v492 = vadd.f32 %v491, 1.0
  %v493 = vrcp.pop %v492
  %v494 = vmul.f32 %v492, %v493
  %v495 = vsub.f32 1.0, %v494
  %v496 = vmul.f32 %v493, %v495
  %v497 = vadd.f32 %v493, %v496
  %vm498 = vweird.f32 %v492
  %vm499 = vweird.f32 %v493
  %vm500 = vmor %vm498, %vm499
  %v501 = vsel %vm500, %v493, %v497
  %v502 = vand.u32 2147483647, %v492
  %vm503 = vcmp.eq.f32.partialorder %v502, 8.507059e+37
  %v504 = vand.u32 %v492, 2147483648
  %v505 = vor.u32 1.1754944e-38, %v504
  %v506 = vsel %vm503, %v505, %v501
  %v507 = vmul.f32 1.0, %v506
  %v508 = vtanh.pop %v488
  %v509 = vmul.f32 %v507, %v461
  %511 = vrot.lane.b32.xlu0 %v508, 64
  %v512 = vpop.permute.xlu0 %511
  %v514 = vmul.f32 %v507, %v512
  %516 = vrot.lane.b32.xlu0 %v514, 32
  %v517 = vpop.permute.xlu0 %516
  %v519 = vadd.f32 %v509, %v517
  %v520 = vtanh.pop %v519
  %522 = vrot.lane.b32.xlu0 %v520, 64
  %v523 = vpop.permute.xlu0 %522
  %v525 = vmul.f32 %v507, %v523
  %v526 = vpack.c.bf16 %v525, %v525
  %528 = vrot.lane.b32.xlu0 %v526, 32
  %v529 = vpop.permute.xlu0 %528
  %v531 = vsel %vm70, %v529, 0
  %533 = vmatpush.bf16.msra.mxu0 0
  %534 = vmatpush.bf16.msra.mxu0 0
  %535 = vmatpush.bf16.msra.mxu0 0
  %536 = vmatpush.bf16.msra.mxu0 0
  %537 = vmatpush.bf16.msra.mxu0 0
  %538 = vmatpush.bf16.msra.mxu0 0
  %539 = vmatpush.bf16.msra.mxu0 %v121
  %540 = vmatpush.bf16.msra.mxu0 %v120
  %541 = vmatmul.bf16.gmra.mxu0 %v531
  %v542 = vpop.f32.mrf.mxu0
  %v543 = vadd.f32 0.0, %v542
  %v544 = vpop.f32.mrf.mxu0
  %545 = vdwg.mxu0
  %v546 = vadd.f32 %v110, %v543
  %v547 = vxor.u32 %v546, 2147483648
  %v548 = vmul.f32 %v547, 1.442695
  %v549 = vpow.pop %v548
  %v550 = vadd.f32 %v549, 1.0
  %v551 = vrcp.pop %v550
  %v552 = vmul.f32 %v550, %v551
  %v553 = vsub.f32 1.0, %v552
  %v554 = vmul.f32 %v551, %v553
  %v555 = vadd.f32 %v551, %v554
  %vm556 = vweird.f32 %v550
  %vm557 = vweird.f32 %v551
  %vm558 = vmor %vm556, %vm557
  %v559 = vsel %vm558, %v551, %v555
  %v560 = vand.u32 2147483647, %v550
  %vm561 = vcmp.eq.f32.partialorder %v560, 8.507059e+37
  %v562 = vand.u32 %v550, 2147483648
  %v563 = vor.u32 1.1754944e-38, %v562
  %v564 = vsel %vm561, %v563, %v559
  %v565 = vmul.f32 1.0, %v564
  %v566 = vtanh.pop %v546
  %v567 = vmul.f32 %v565, %v519
  %569 = vrot.lane.b32.xlu0 %v566, 64
  %v570 = vpop.permute.xlu0 %569
  %v572 = vmul.f32 %v565, %v570
  %574 = vrot.lane.b32.xlu0 %v572, 32
  %v575 = vpop.permute.xlu0 %574
  %v577 = vadd.f32 %v567, %v575
  %v578 = vtanh.pop %v577
  %580 = vrot.lane.b32.xlu0 %v578, 64
  %v581 = vpop.permute.xlu0 %580
  %v583 = vmul.f32 %v565, %v581
  %v584 = vpack.c.bf16 %v583, %v583
  %586 = vrot.lane.b32.xlu0 %v584, 32
  %v587 = vpop.permute.xlu0 %586
  %vm596 = vcmask 257024
  %597 = vst.msk [vmem:[%s4] sm:$0xf] %vm596, %v181
  %598 = vst.msk [vmem:[%s4 + $0x4] sm:$0xf] %vm596, %v239
  %599 = vst.msk [vmem:[%s4 + $0x8] sm:$0xf] %vm596, %v297
  %600 = vst.msk [vmem:[%s4 + $0xc] sm:$0xf] %vm596, %v355
  %601 = vst.msk [vmem:[%s4 + $0x10] sm:$0xf] %vm596, %v413
  %602 = vst.msk [vmem:[%s4 + $0x14] sm:$0xf] %vm596, %v471
  %603 = vst.msk [vmem:[%s4 + $0x18] sm:$0xf] %vm596, %v529
  %604 = vst.msk [vmem:[%s4 + $0x1c] sm:$0xf] %vm596, %v587
  // Predicated region
  $region18: #{tpu_custom_call.1} parent=0 // pred_check
    _
  $region19: #{tpu_custom_call.1} parent=0 // pred_check_branch
    %606 = sbr.rel (0) target = $region21
  $region20: #{tpu_custom_call.1} parent=0 // pred_region
    _
  $region21: #{tpu_custom_call.1} parent=0 // pred_fallthru
    _
  // Predicated region
  $region22: #{tpu_custom_call.1} parent=0 // pred_check
    _
  $region23: #{tpu_custom_call.1} parent=0 // pred_check_branch
    %608 = sbr.rel (0) target = $region25
  $region24: #{tpu_custom_call.1} parent=0 // pred_region
    _
  $region25: #{tpu_custom_call.1} parent=0 // pred_fallthru
    _

</llo_original>
